<compile_context>
chip_gen: v6e
topology: v6e:2x2x1
jax: 0.10.0
libtpu: 0.0.40
codegen_flags: <defaults>
</compile_context>

<pallas_src>
import functools
import math

import jax
import jax.numpy as jnp
from jax.experimental import pallas as pl
from jax.experimental.pallas import tpu as pltpu


# ----------------------------------------------------------------------------
# VMEM budget (generation aware: v5e/v6e have 128 MiB physical, v7x has 64 MiB)
# ----------------------------------------------------------------------------
def _tpu_vmem_capacity_bytes():
    try:
        info = pltpu.get_tpu_info()
        cap = getattr(info, "vmem_capacity_bytes", None)
        if cap:
            return int(cap)
    except Exception:
        pass
    return 64 * 1024 * 1024          # conservative (v7x-sized) fallback


_VMEM_CAPACITY = _tpu_vmem_capacity_bytes()
# Combined double-buffered tile footprint cap: <= 1/4 of physical VMEM and
# never above 16 MiB (keeps v5e's single vst slot / 16 MiB scoped default sane).
_VMEM_TILE_BUDGET = min(max(_VMEM_CAPACITY // 4, 8 * 1024 * 1024),
                        16 * 1024 * 1024)
_VMEM_LIMIT_BYTES = int(min(max(_VMEM_CAPACITY // 2, 32 * 1024 * 1024),
                            64 * 1024 * 1024))


def _round_up(x, m):
    return ((x + m - 1) // m) * m


def _pick_tile(dim, full_cap, cands):
    """Small dims use one full-dim block (legal when block dim == array dim);
    larger dims use an aligned divisor tile; zero-padding is a last resort."""
    if dim <= full_cap:
        return dim, dim
    for t in cands:
        if dim % t == 0:
            return t, dim
    t = cands[-1]
    return t, _round_up(dim, t)


def _pick_n_tile(N, tm, tk, gk, gm, a_esz, b_esz, o_esz, has_bias, budget):
    """Budget-aware N tile: as wide (lane-dense) as VMEM allows, preferring to
    keep >= 2 column blocks when the row grid has only 1 block (megacore)."""
    cands = []
    if N <= 4096:
        cands.append(N)
    cands += [c for c in (4096, 2048, 1024, 512, 256, 128) if c < N]
    fallback = None
    for t in cands:
        Np = N if t == N else _round_up(N, t)
        fp = (2 * tm * tk * a_esz + 2 * tk * t * b_esz + 2 * tm * t * o_esz
              + (tm * t * 4 if gk > 1 else 0) + (2 * t * 4 if has_bias else 0))
        if fp > budget:
            continue
        if gm == 1 and (Np // t) < 2:
            if fallback is None:
                fallback = (t, Np)      # usable, but one TensorCore would idle
            continue
        return t, Np
    if fallback is not None:
        return fallback
    return 128, _round_up(N, 128)


# ----------------------------------------------------------------------------
# Pallas matmul with fused epilogue (bias + row-normalize + scale + tanh)
# ----------------------------------------------------------------------------
def _mm_dot(a_ref, b_ref, trans_b, compute_dtype):
    a = a_ref[...].astype(compute_dtype)
    b = b_ref[...].astype(compute_dtype)
    if trans_b:      # contract last dims of both operands (no materialized .T)
        return jax.lax.dot_general(a, b, (((1,), (1,)), ((), ())),
                                   preferred_element_type=jnp.float32)
    return jnp.dot(a, b, preferred_element_type=jnp.float32)


def _mm_epilogue(y, bias, scale, activation, row_normalize, out_dtype):
    if bias is not None:
        y = y + bias
    if row_normalize:              # F.normalize(., dim=1); rsqrt -> EUP slot
        ss = jnp.sum(y * y, axis=-1, keepdims=True)
        y = y * jax.lax.rsqrt(jnp.maximum(ss, jnp.float32(1e-24)))
    if scale != 1.0:
        y = y * jnp.float32(scale)
    if activation == "tanh":       # EUP slot: ~free next to the MXU drain
        y = jnp.tanh(y)
    return y.astype(out_dtype)


def _mm_kernel_single(a_ref, b_ref, o_ref, *, trans_b, compute_dtype,
                      scale, activation, row_normalize):
    y = _mm_dot(a_ref, b_ref, trans_b, compute_dtype)
    o_ref[...] = _mm_epilogue(y, None, scale, activation, row_normalize,
                              o_ref.dtype)


def _mm_kernel_single_bias(a_ref, b_ref, bias_ref, o_ref, *, trans_b,
                           compute_dtype, scale, activation, row_normalize):
    y = _mm_dot(a_ref, b_ref, trans_b, compute_dtype)
    o_ref[...] = _mm_epilogue(y, bias_ref[...].astype(jnp.float32),
                              scale, activation, row_normalize, o_ref.dtype)


def _mm_kernel_acc(a_ref, b_ref, o_ref, acc_ref, *, trans_b, compute_dtype,
                   scale, activation, row_normalize):
    @pl.when(pl.program_id(2) == 0)
    def _():
        acc_ref[...] = jnp.zeros_like(acc_ref)
    acc_ref[...] += _mm_dot(a_ref, b_ref, trans_b, compute_dtype)

    @pl.when(pl.program_id(2) == pl.num_programs(2) - 1)
    def _():
        o_ref[...] = _mm_epilogue(acc_ref[...], None, scale, activation,
                                  row_normalize, o_ref.dtype)


def _mm_kernel_acc_bias(a_ref, b_ref, bias_ref, o_ref, acc_ref, *, trans_b,
                        compute_dtype, scale, activation, row_normalize):
    @pl.when(pl.program_id(2) == 0)
    def _():
        acc_ref[...] = jnp.zeros_like(acc_ref)
    acc_ref[...] += _mm_dot(a_ref, b_ref, trans_b, compute_dtype)

    @pl.when(pl.program_id(2) == pl.num_programs(2) - 1)
    def _():
        o_ref[...] = _mm_epilogue(acc_ref[...], bias_ref[...].astype(jnp.float32),
                                  scale, activation, row_normalize, o_ref.dtype)


def pallas_matmul(a, b, *, trans_b=False, bias=None, scale=1.0, activation=None,
                  row_normalize=False, out_dtype=jnp.float32,
                  compute_dtype=jnp.bfloat16):
    """out = act(scale * maybe_L2rownorm(a @ (b.T if trans_b else b) + bias)).

    The cast to compute_dtype happens inside the kernel (no HBM operand copies);
    accumulation is f32 on the MXU.
    """
    M, K = a.shape
    if trans_b:
        N, K2 = b.shape
    else:
        K2, N = b.shape
    assert K == K2, (a.shape, b.shape, trans_b)

    a_esz = a.dtype.itemsize
    b_esz = b.dtype.itemsize
    o_esz = jnp.dtype(out_dtype).itemsize
    has_bias = bias is not None

    tm, Mp = _pick_tile(M, 512, (512, 256, 128, 64, 32, 16, 8))
    tk, Kp = _pick_tile(K, 1024, (1024, 512, 256, 128))
    gm, gk = Mp // tm, Kp // tk
    if row_normalize:
        tn, Np = N, N          # whole row must live in one block for the norm
    else:
        tn, Np = _pick_n_tile(N, tm, tk, gk, gm, a_esz, b_esz, o_esz,
                              has_bias, _VMEM_TILE_BUDGET)
    gn = Np // tn

    a_p = a if (Mp, Kp) == (M, K) else jnp.pad(a, ((0, Mp - M), (0, Kp - K)))
    if trans_b:
        b_p = b if (Np, Kp) == (N, K) else jnp.pad(b, ((0, Np - N), (0, Kp - K)))
        b_spec = pl.BlockSpec((tn, tk), lambda i, j, k: (j, k))
    else:
        b_p = b if (Kp, Np) == (K, N) else jnp.pad(b, ((0, Kp - K), (0, Np - N)))
        b_spec = pl.BlockSpec((tk, tn), lambda i, j, k: (k, j))

    in_specs = [pl.BlockSpec((tm, tk), lambda i, j, k: (i, k)), b_spec]
    args = [a_p, b_p]
    if has_bias:
        bias2d = bias.reshape(1, N).astype(jnp.float32)
        if Np != N:
            bias2d = jnp.pad(bias2d, ((0, 0), (0, Np - N)))
        in_specs.append(pl.BlockSpec((1, tn), lambda i, j, k: (0, j)))
        args.append(bias2d)

    ep = dict(trans_b=trans_b, compute_dtype=compute_dtype, scale=float(scale),
              activation=activation, row_normalize=row_normalize)
    if gk == 1:   # K fits one block: no accumulator scratch / init-finalize
        kernel = functools.partial(
            _mm_kernel_single_bias if has_bias else _mm_kernel_single, **ep)
        scratch = []
    else:
        kernel = functools.partial(
            _mm_kernel_acc_bias if has_bias else _mm_kernel_acc, **ep)
        scratch = [pltpu.VMEM((tm, tn), jnp.float32)]

    out = pl.pallas_call(
        kernel,
        out_shape=jax.ShapeDtypeStruct((Mp, Np), out_dtype),
        grid_spec=pltpu.PrefetchScalarGridSpec(
            num_scalar_prefetch=0, grid=(gm, gn, gk),
            in_specs=in_specs,
            out_specs=pl.BlockSpec((tm, tn), lambda i, j, k: (i, j)),
            scratch_shapes=scratch),
        compiler_params=pltpu.CompilerParams(
            dimension_semantics=("parallel", "parallel", "arbitrary"),
            vmem_limit_bytes=_VMEM_LIMIT_BYTES),
    )(*args)

    if (Mp, Np) != (M, N):
        out = out[:M, :N]
    return out


# ----------------------------------------------------------------------------
# Batched "dist_cal" Gram kernel: softmax rows -> L2-normalize rows -> P @ P.T
# ----------------------------------------------------------------------------
def _dist_gram_kernel(x_ref, o_ref):
    x = x_ref[0]                                    # (n, P) scaled logits, f32
    m = jnp.max(x, axis=-1, keepdims=True)          # stable softmax
    e = jnp.exp(x - m)
    p = e * pl.reciprocal(jnp.sum(e, axis=-1, keepdims=True), approx=True)
    ss = jnp.sum(p * p, axis=-1, keepdims=True)     # F.normalize(p, dim=1)
    pn = (p * jax.lax.rsqrt(jnp.maximum(ss, jnp.float32(1e-24)))
          ).astype(jnp.bfloat16)
    # Gram = pn @ pn.T via a transposed-RHS dot (no in-kernel .T), f32 accum.
    o_ref[0] = jax.lax.dot_general(pn, pn, (((1,), (1,)), ((), ())),
                                   preferred_element_type=jnp.float32)


def pallas_dist_gram(logits):
    """logits: (B, n, P) pre-scaled logits (ragged P padded with -1e30)."""
    B, n, P = logits.shape
    return pl.pallas_call(
        _dist_gram_kernel,
        out_shape=jax.ShapeDtypeStruct((B, n, n), jnp.float32),
        grid_spec=pltpu.PrefetchScalarGridSpec(
            num_scalar_prefetch=0, grid=(B,),
            in_specs=[pl.BlockSpec((1, n, P), lambda b: (b, 0, 0))],
            out_specs=pl.BlockSpec((1, n, n), lambda b: (b, 0, 0))),
        compiler_params=pltpu.CompilerParams(
            dimension_semantics=("parallel",),
            vmem_limit_bytes=_VMEM_LIMIT_BYTES),
    )(logits.astype(jnp.float32))


# ----------------------------------------------------------------------------
# Encoder stub (conv -> BN / SplitBN -> ReLU -> GAP -> FC[+fused projection])
# ----------------------------------------------------------------------------
def init_encoder_params(key, c_in, c_mid, dim):
    k1, k2 = jax.random.split(key, 2)
    return {
        'conv_w': jax.random.normal(k1, (c_mid, c_in, 3, 3), jnp.float32) * 0.1,
        'bn_gamma': jnp.ones((c_mid,), jnp.float32),
        'bn_beta': jnp.zeros((c_mid,), jnp.float32),
        'fc_w': jax.random.normal(k2, (dim, c_mid), jnp.float32) * 0.1,
        'fc_b': jnp.zeros((dim,), jnp.float32),
    }


def encoder_forward(x_nchw, params, *, split_bn, num_splits=2, eps=1e-5,
                    fc_scale=1.0, fc_activation=None, fc_row_normalize=False):
    """conv3x3 -> (Split)BN -> ReLU -> GAP -> FC; the projection epilogue
    (bias + optional L2 row-normalize + tanh(alpha*.)) is fused into the FC
    Pallas matmul."""
    N, _, H, W = x_nchw.shape
    C1 = params['conv_w'].shape[0]

    # NHWC (channels on lanes).  TODO(synk): conv stays on lax.conv_general_dilated
    # (no im2col HBM blow-up); a dedicated Pallas conv only pays once a real
    # backbone with >=128 output channels replaces this stub.
    x = jnp.transpose(x_nchw, (0, 2, 3, 1))
    w_hwio = jnp.transpose(params['conv_w'], (2, 3, 1, 0))
    conv = jax.lax.conv_general_dilated(
        x, w_hwio, window_strides=(1, 1), padding='SAME',
        dimension_numbers=('NHWC', 'HWIO', 'NHWC'))

    # TODO(synk): BatchNorm needs global batch statistics, so it cannot be fused
    # into a single-pass matmul epilogue; BN/ReLU/GAP stay as cheap XLA glue.
    gamma, beta = params['bn_gamma'], params['bn_beta']
    if split_bn:
        # SplitBatchNorm training mode: stats per (n % num_splits, channel),
        # matching torch's input.view(-1, C*num_splits, H, W).
        xs = conv.reshape(N // num_splits, num_splits, H, W, C1)
        mean = xs.mean(axis=(0, 2, 3))
        var = xs.var(axis=(0, 2, 3))                 # biased, like F.batch_norm
        ys = (xs - mean[None, :, None, None, :]) * \
            jax.lax.rsqrt(var + eps)[None, :, None, None, :]
        bn = (ys * gamma + beta).reshape(N, H, W, C1)
    else:
        mean = conv.mean(axis=(0, 1, 2))
        var = conv.var(axis=(0, 1, 2))
        bn = (conv - mean) * jax.lax.rsqrt(var + eps) * gamma + beta

    act = jnp.maximum(bn, 0.0)
    pooled = act.mean(axis=(1, 2))                   # adaptive avg pool to 1x1
    # fc_w is (dim, c_mid): consumed untransposed through the trans_b path.
    return pallas_matmul(pooled, params['fc_w'], trans_b=True,
                         bias=params['fc_b'], scale=fc_scale,
                         activation=fc_activation,
                         row_normalize=fc_row_normalize)


# ----------------------------------------------------------------------------
# Loss helpers (matmul products are computed once by the Pallas calls above)
# ----------------------------------------------------------------------------
def instance_loss_one_domain(q, k, im_id, l_all_scaled, T):
    """l_all_scaled = q @ queue / T.  The own column is masked (equivalent to
    the reference's masked_select: logsumexp ignores a -inf-like column)."""
    l_pos = jnp.sum(q * k, axis=1) / T
    Kq = l_all_scaled.shape[1]
    own = jnp.arange(Kq, dtype=jnp.int32)[None, :] == im_id[:, None].astype(jnp.int32)
    l_neg = jnp.where(own, jnp.float32(-1e30), l_all_scaled)
    lse = jnp.logaddexp(l_pos, jax.nn.logsumexp(l_neg, axis=1))
    return jnp.mean(lse - l_pos)       # CrossEntropy with all labels == 0


def cluster_loss_one_domain(im_id, all_score_scaled, k_proto_scores,
                            im2cluster_list, filterthresh):
    """all_score_scaled = q @ queue / T (loop-invariant, hoisted & reused);
       k_proto_scores[l] = k @ centroids[l].T / T (own-domain protos only)."""
    log_prob = all_score_scaled - jax.nn.logsumexp(all_score_scaled, axis=1,
                                                   keepdims=True)
    mask = jnp.ones(all_score_scaled.shape, jnp.float32)
    losses = []
    for lvl, im2cluster in enumerate(im2cluster_list):
        cor_cluster_id = im2cluster[im_id]
        mask = mask * (cor_cluster_id[:, None]
                       == im2cluster[None, :]).astype(jnp.float32)
        mean_log_prob_pos = (jnp.sum(mask * log_prob, axis=1)
                             / (jnp.sum(mask, axis=1) + 1e-8))
        # filter = softmax(k @ protos.T / T)[i, cor_cluster_id] > thresh
        probs = jax.nn.softmax(k_proto_scores[lvl], axis=1)
        n_proto = probs.shape[1]
        onehot = (jnp.arange(n_proto, dtype=jnp.int32)[None, :]
                  == cor_cluster_id[:, None].astype(jnp.int32)).astype(probs.dtype)
        pos_prob = jnp.sum(probs * onehot, axis=1)
        filters = (pos_prob > filterthresh).astype(jnp.float32)
        losses.append(-jnp.sum(filters * mean_log_prob_pos)
                      / (jnp.sum(filters) + 1e-8))
    return jnp.mean(jnp.stack(losses))


# ----------------------------------------------------------------------------
# UCDIR forward (training branch, cluster_result provided)
# ----------------------------------------------------------------------------
def ucdir_forward(params_q, params_k, queue_A, queue_B,
                  im_q_A, im_q_B, im_k_A, im_id_A, im_k_B, im_id_B,
                  cluster_result, shuffle_key, num_cluster,
                  m=0.999, T=0.1, selfentro_temp=0.2,
                  cwcon_filterthresh=0.2, alpha=1.0):
    n_A = im_q_A.shape[0]
    n_levels = len(cluster_result['centroids_A'])

    # ---- query branch: tanh(alpha * encoder_q(.)) fused into the FC matmul ----
    im_q = jnp.concatenate([im_q_A, im_q_B], axis=0)
    q = encoder_forward(im_q, params_q, split_bn=False,
                        fc_scale=alpha, fc_activation="tanh")
    q_A, q_B = q[:n_A], q[n_A:]

    # ---- key branch (momentum encoder, shuffle-BN; no grad in torch) ----
    params_k = {name: m * params_k[name] + (1.0 - m) * params_q[name]
                for name in params_k}
    im_k = jnp.concatenate([im_k_A, im_k_B], axis=0)
    # TODO(synk): torch uses the global CUDA RNG for the shuffle; here the
    # permutation comes from an explicit, deterministic JAX key.
    idx_shuffle = jax.random.permutation(shuffle_key, im_k.shape[0])
    idx_unshuffle = jnp.argsort(idx_shuffle)
    # tanh(alpha * F.normalize(encoder_k(.))) fully fused into the FC epilogue
    k = encoder_forward(im_k[idx_shuffle], params_k, split_bn=True,
                        fc_scale=alpha, fc_activation="tanh",
                        fc_row_normalize=True)
    k = k[idx_unshuffle]
    k_A, k_B = k[:n_A], k[n_A:]

    # ---- dequeue & enqueue (index_copy_ along queue columns) ----
    queue_A = queue_A.at[:, im_id_A].set(k_A.T)
    queue_B = queue_B.at[:, im_id_B].set(k_B.T)

    # ---- per-domain queue logits (no cross-domain quadrants, /T fused) ----
    l_all_A = pallas_matmul(q_A, queue_A, scale=1.0 / T)      # (N, K_A)
    l_all_B = pallas_matmul(q_B, queue_B, scale=1.0 / T)      # (N, K_B)

    # ---- feature-vs-prototype products (f32 path: feeds /0.01 dist loss) ----
    proto_off, protos_by_dom = {}, {}
    for dom in ("A", "B"):
        pieces, offs, off = [], [], 0
        for lvl in range(n_levels):
            c = cluster_result['centroids_' + dom][lvl]
            offs.append((off, c.shape[0]))
            pieces.append(c)
            off += c.shape[0]
        protos_by_dom[dom] = jnp.concatenate(pieces, axis=0)
        proto_off[dom] = offs
    PA = protos_by_dom['A'].shape[0]
    protos_all = jnp.concatenate([protos_by_dom['A'], protos_by_dom['B']], axis=0)

    # q features need every (domain, level) prototype set -> one batched call;
    # k features only need their own domain's prototypes -> two thin calls.
    sim_q = pallas_matmul(q, protos_all, trans_b=True,
                          compute_dtype=jnp.float32)
    sim_k = {
        'A': pallas_matmul(k_A, protos_by_dom['A'], trans_b=True,
                           compute_dtype=jnp.float32),
        'B': pallas_matmul(k_B, protos_by_dom['B'], trans_b=True,
                           compute_dtype=jnp.float32),
    }

    def q_sim(feat_dom, proto_dom, lvl):
        r0 = 0 if feat_dom == 'A' else n_A
        off, cnt = proto_off[proto_dom][lvl]
        c0 = off + (0 if proto_dom == 'A' else PA)
        return sim_q[r0:r0 + n_A, c0:c0 + cnt]

    def k_sim(dom, lvl):
        off, cnt = proto_off[dom][lvl]
        return sim_k[dom][:, off:off + cnt]

    # ---- instance contrastive loss ----
    losses_instcon = {
        'domain_A': instance_loss_one_domain(q_A, k_A, im_id_A, l_all_A, T),
        'domain_B': instance_loss_one_domain(q_B, k_B, im_id_B, l_all_B, T),
    }

    # ---- cluster contrastive loss (q @ queue reused from l_all_*) ----
    losses_cwcon = {}
    for dom, im_id, all_score in (('A', im_id_A, l_all_A), ('B', im_id_B, l_all_B)):
        k_scores = [k_sim(dom, lvl) / T for lvl in range(n_levels)]
        losses_cwcon['domain_' + dom] = cluster_loss_one_domain(
            im_id, all_score, k_scores,
            cluster_result['im2cluster_' + dom], cwcon_filterthresh)

    # ---- self-entropy loss ----
    losses_selfentro = {}
    for feat_dom in ('A', 'B'):
        for cross in ('A', 'B'):
            for lvl in range(n_levels):
                self_sz = cluster_result['centroids_' + feat_dom][lvl].shape[0]
                cross_sz = cluster_result['centroids_' + cross][lvl].shape[0]
                if str(self_sz) in num_cluster:
                    logits = q_sim(feat_dom, cross, lvl) / selfentro_temp
                    logp = jax.nn.log_softmax(logits, axis=1)
                    p = jax.nn.softmax(logits, axis=1)
                    val = -jnp.mean(jnp.sum(logp * p, axis=1))
                    key = ('feat_domain_' + feat_dom + '-proto_domain_' + cross
                           + '-cluster_' + str(cross_sz))
                    losses_selfentro.setdefault(key, []).append(val)

    # ---- dist-of-logit loss: all Gram matrices in one batched Pallas call ----
    losses_distlogit = {}
    slabs, meta = [], []
    for lvl in range(n_levels):
        pa = cluster_result['centroids_A'][lvl]
        if str(pa.shape[0]) in num_cluster:
            for dom in ('A', 'B'):
                slabs.append(q_sim(dom, 'A', lvl) / 0.01)
                slabs.append(q_sim(dom, 'B', lvl) / 0.01)
                meta.append('feat_domain_' + dom + '_A_B' + '-cluster_'
                            + str(pa.shape[0]))
    if slabs:
        p_max = max(s.shape[1] for s in slabs)
        padded = [s if s.shape[1] == p_max else
                  jnp.pad(s, ((0, 0), (0, p_max - s.shape[1])),
                          constant_values=-1e30)
                  for s in slabs]
        grams = pallas_dist_gram(jnp.stack(padded, axis=0))
        for i, key in enumerate(meta):
            # d1 - d2 = (1 - G1) - (1 - G2) = G2 - G1;  F.pairwise_distance eps=1e-6
            diff = grams[2 * i + 1] - grams[2 * i] + 1e-6
            losses_distlogit.setdefault(key, []).append(
                jnp.mean(jnp.sum(diff * diff, axis=1)))  # pairwise_distance ** 2

    aux = {'queue_A': queue_A, 'queue_B': queue_B, 'params_k': params_k}
    return (losses_instcon, q_A, q_B, losses_selfentro,
            losses_distlogit, losses_cwcon), aux


# ----------------------------------------------------------------------------
if __name__ == "__main__":
    key = jax.random.PRNGKey(0)
    (k_enc, k_qA, k_qB, k_kA, k_kB, k_queueA, k_queueB,
     k_idA, k_idB, k_cluA, k_cluB, k_cenA, k_cenB, k_shuf) = jax.random.split(key, 14)

    # small shapes
    N = 4            # batch per domain
    C, H, W = 3, 16, 16
    C_MID = 8
    DIM = 32
    K_A = K_B = 128
    N_PROTO = 16
    NUM_CLUSTER = (str(N_PROTO),)

    def normalize_rows(x, eps=1e-12):
        n = jnp.sqrt(jnp.sum(x * x, axis=1, keepdims=True))
        return x / jnp.maximum(n, eps)

    # encoders: encoder_k starts as an exact copy of encoder_q
    params_q = init_encoder_params(k_enc, C, C_MID, DIM)
    params_k = {name: v for name, v in params_q.items()}

    # queues: randn(dim, K), column-normalized
    def make_queue(kk, K):
        qb = jax.random.normal(kk, (DIM, K), jnp.float32)
        return qb / jnp.sqrt(jnp.sum(qb * qb, axis=0, keepdims=True))

    queue_A = make_queue(k_queueA, K_A)
    queue_B = make_queue(k_queueB, K_B)

    # inputs
    im_q_A = jax.random.normal(k_qA, (N, C, H, W), jnp.float32)
    im_q_B = jax.random.normal(k_qB, (N, C, H, W), jnp.float32)
    im_k_A = jax.random.normal(k_kA, (N, C, H, W), jnp.float32)
    im_k_B = jax.random.normal(k_kB, (N, C, H, W), jnp.float32)
    im_id_A = jax.random.choice(k_idA, K_A, shape=(N,), replace=False)
    im_id_B = jax.random.choice(k_idB, K_B, shape=(N,), replace=False)

    # cluster_result (one clustering level per domain)
    cluster_result = {
        'im2cluster_A': [jax.random.randint(k_cluA, (K_A,), 0, N_PROTO)],
        'im2cluster_B': [jax.random.randint(k_cluB, (K_B,), 0, N_PROTO)],
        'centroids_A': [normalize_rows(
            jax.random.normal(k_cenA, (N_PROTO, DIM), jnp.float32))],
        'centroids_B': [normalize_rows(
            jax.random.normal(k_cenB, (N_PROTO, DIM), jnp.float32))],
    }

    ucdir_forward_jit = jax.jit(
        ucdir_forward,
        static_argnames=('num_cluster', 'm', 'T', 'selfentro_temp',
                         'cwcon_filterthresh', 'alpha'))

    outputs, aux = ucdir_forward_jit(
        params_q, params_k, queue_A, queue_B,
        im_q_A, im_q_B, im_k_A, im_id_A, im_k_B, im_id_B,
        cluster_result, k_shuf,
        num_cluster=NUM_CLUSTER,
        m=0.999, T=0.1, selfentro_temp=0.2, cwcon_filterthresh=0.2,
        alpha=float(math.pow(1.0, 0.5)))

    (losses_instcon, q_A, q_B, losses_selfentro,
     losses_distlogit, losses_cwcon) = outputs

    # block on everything
    jax.block_until_ready(losses_instcon['domain_A'])
    jax.block_until_ready(losses_instcon['domain_B'])
    jax.block_until_ready(losses_cwcon['domain_A'])
    jax.block_until_ready(losses_cwcon['domain_B'])
    jax.block_until_ready(q_A)
    jax.block_until_ready(q_B)
    for v in losses_selfentro.values():
        jax.block_until_ready(v[0])
    for v in losses_distlogit.values():
        jax.block_until_ready(v[0])
    jax.block_until_ready(aux['queue_A'])
    jax.block_until_ready(aux['queue_B'])

    print("KERNEL_OK")
</pallas_src>

<mosaic_0001>
module attributes {stable_mosaic.version = 11 : i64} {
  func.func @_mm_kernel_single_bias(%arg0: i32, %arg1: i32, %arg2: i32, %arg3: memref<8x8xf32, #tpu.memory_space<vmem>>, %arg4: memref<32x8xf32, #tpu.memory_space<vmem>>, %arg5: memref<1x32xf32, #tpu.memory_space<vmem>>, %arg6: memref<8x32xf32, #tpu.memory_space<vmem>>) attributes {dimension_semantics = [#tpu.dimension_semantics<parallel>, #tpu.dimension_semantics<parallel>, #tpu.dimension_semantics<arbitrary>], iteration_bounds = array<i64: 1, 1, 1>, scalar_prefetch = 0 : i64, scratch_operands = 0 : i64, tpu.core_type = #tpu.core_type<tc>, window_params = [{transform_indices = @transform_0, window_bounds = array<i64: 8, 8>}, {transform_indices = @transform_1, window_bounds = array<i64: 32, 8>}, {transform_indices = @transform_2, window_bounds = array<i64: 1, 32>}, {transform_indices = @transform_3, window_bounds = array<i64: 8, 32>}]} {
    %c0 = arith.constant 0 : index
    %c0_0 = arith.constant 0 : index
    %0 = vector.load %arg3[%c0, %c0_0] : memref<8x8xf32, #tpu.memory_space<vmem>>, vector<8x8xf32>
    %1 = arith.truncf %0 : vector<8x8xf32> to vector<8x8xbf16>
    %c0_1 = arith.constant 0 : index
    %c0_2 = arith.constant 0 : index
    %2 = vector.load %arg4[%c0_1, %c0_2] : memref<32x8xf32, #tpu.memory_space<vmem>>, vector<32x8xf32>
    %3 = arith.truncf %2 : vector<32x8xf32> to vector<32x8xbf16>
    %cst = arith.constant dense<0.000000e+00> : vector<8x32xf32>
    %4 = tpu.matmul %1, %3, %cst {dimension_numbers = #tpu.dot_dimension_numbers<[1], [1], [0], [0], [0, 0, 1, 0], [], []>} : vector<8x8xbf16>, vector<32x8xbf16>, vector<8x32xf32> -> vector<8x32xf32>
    %c0_3 = arith.constant 0 : index
    %c0_4 = arith.constant 0 : index
    %5 = vector.load %arg5[%c0_3, %c0_4] : memref<1x32xf32, #tpu.memory_space<vmem>>, vector<1x32xf32>
    %6 = vector.broadcast %5 : vector<1x32xf32> to vector<8x32xf32>
    %7 = arith.addf %4, %6 : vector<8x32xf32>
    %8 = arith.mulf %7, %7 : vector<8x32xf32>
    %cst_5 = arith.constant dense<0.000000e+00> : vector<8xf32>
    %9 = vector.multi_reduction <add>, %8, %cst_5 [1] : vector<8x32xf32> to vector<8xf32>
    %10 = vector.shape_cast %9 : vector<8xf32> to vector<8x1xf32>
    %cst_6 = arith.constant 1.000000e-24 : f32
    %11 = vector.broadcast %cst_6 : f32 to vector<8x1xf32>
    %12 = arith.maximumf %10, %11 : vector<8x1xf32>
    %13 = math.rsqrt %12 : vector<8x1xf32>
    %14 = vector.broadcast %13 : vector<8x1xf32> to vector<8x32xf32>
    %15 = arith.mulf %7, %14 : vector<8x32xf32>
    %16 = math.tanh %15 : vector<8x32xf32>
    %c0_7 = arith.constant 0 : index
    %c0_8 = arith.constant 0 : index
    %17 = vector.load %arg6[%c0_7, %c0_8] : memref<8x32xf32, #tpu.memory_space<vmem>>, vector<8x32xf32>
    tpu.vector_store %arg6[%c0_7, %c0_8], %16 {strides = array<i32>} : memref<8x32xf32, #tpu.memory_space<vmem>>, vector<8x32xf32>,
    return
  }
  func.func @transform_0(%arg0: i32, %arg1: i32, %arg2: i32) -> (i32, i32) {
    %c0_i32 = arith.constant 0 : i32
    return %arg0, %arg2 : i32, i32
  }
  func.func @transform_1(%arg0: i32, %arg1: i32, %arg2: i32) -> (i32, i32) {
    %c0_i32 = arith.constant 0 : i32
    return %arg1, %arg2 : i32, i32
  }
  func.func @transform_2(%arg0: i32, %arg1: i32, %arg2: i32) -> (i32, i32) {
    %c0_i32 = arith.constant 0 : i32
    %c0_i32_0 = arith.constant 0 : i32
    return %c0_i32, %arg1 : i32, i32
  }
  func.func @transform_3(%arg0: i32, %arg1: i32, %arg2: i32) -> (i32, i32) {
    %c0_i32 = arith.constant 0 : i32
    return %arg0, %arg1 : i32, i32
  }
}

module attributes {stable_mosaic.version = 11 : i64} {
  func.func @_mm_kernel_single_bias(%arg0: i32, %arg1: i32, %arg2: i32, %arg3: memref<8x8xf32, #tpu.memory_space<vmem>>, %arg4: memref<32x8xf32, #tpu.memory_space<vmem>>, %arg5: memref<1x32xf32, #tpu.memory_space<vmem>>, %arg6: memref<8x32xf32, #tpu.memory_space<vmem>>) attributes {dimension_semantics = [#tpu.dimension_semantics<parallel>, #tpu.dimension_semantics<parallel>, #tpu.dimension_semantics<arbitrary>], iteration_bounds = array<i64: 1, 1, 1>, scalar_prefetch = 0 : i64, scratch_operands = 0 : i64, tpu.core_type = #tpu.core_type<tc>, window_params = [{transform_indices = @transform_0, window_bounds = array<i64: 8, 8>}, {transform_indices = @transform_1, window_bounds = array<i64: 32, 8>}, {transform_indices = @transform_2, window_bounds = array<i64: 1, 32>}, {transform_indices = @transform_3, window_bounds = array<i64: 8, 32>}]} {
    %c0 = arith.constant 0 : index
    %c0_0 = arith.constant 0 : index
    %0 = vector.load %arg3[%c0, %c0_0] : memref<8x8xf32, #tpu.memory_space<vmem>>, vector<8x8xf32>
    %1 = arith.truncf %0 : vector<8x8xf32> to vector<8x8xbf16>
    %c0_1 = arith.constant 0 : index
    %c0_2 = arith.constant 0 : index
    %2 = vector.load %arg4[%c0_1, %c0_2] : memref<32x8xf32, #tpu.memory_space<vmem>>, vector<32x8xf32>
    %3 = arith.truncf %2 : vector<32x8xf32> to vector<32x8xbf16>
    %cst = arith.constant dense<0.000000e+00> : vector<8x32xf32>
    %4 = tpu.matmul %1, %3, %cst {dimension_numbers = #tpu.dot_dimension_numbers<[1], [1], [0], [0], [0, 0, 1, 0], [], []>} : vector<8x8xbf16>, vector<32x8xbf16>, vector<8x32xf32> -> vector<8x32xf32>
    %c0_3 = arith.constant 0 : index
    %c0_4 = arith.constant 0 : index
    %5 = vector.load %arg5[%c0_3, %c0_4] : memref<1x32xf32, #tpu.memory_space<vmem>>, vector<1x32xf32>
    %6 = vector.broadcast %5 : vector<1x32xf32> to vector<8x32xf32>
    %7 = arith.addf %4, %6 : vector<8x32xf32>
    %8 = math.tanh %7 : vector<8x32xf32>
    %c0_5 = arith.constant 0 : index
    %c0_6 = arith.constant 0 : index
    %9 = vector.load %arg6[%c0_5, %c0_6] : memref<8x32xf32, #tpu.memory_space<vmem>>, vector<8x32xf32>
    tpu.vector_store %arg6[%c0_5, %c0_6], %8 {strides = array<i32>} : memref<8x32xf32, #tpu.memory_space<vmem>>, vector<8x32xf32>,
    return
  }
  func.func @transform_0(%arg0: i32, %arg1: i32, %arg2: i32) -> (i32, i32) {
    %c0_i32 = arith.constant 0 : i32
    return %arg0, %arg2 : i32, i32
  }
  func.func @transform_1(%arg0: i32, %arg1: i32, %arg2: i32) -> (i32, i32) {
    %c0_i32 = arith.constant 0 : i32
    return %arg1, %arg2 : i32, i32
  }
  func.func @transform_2(%arg0: i32, %arg1: i32, %arg2: i32) -> (i32, i32) {
    %c0_i32 = arith.constant 0 : i32
    %c0_i32_0 = arith.constant 0 : i32
    return %c0_i32, %arg1 : i32, i32
  }
  func.func @transform_3(%arg0: i32, %arg1: i32, %arg2: i32) -> (i32, i32) {
    %c0_i32 = arith.constant 0 : i32
    return %arg0, %arg1 : i32, i32
  }
}

module attributes {stable_mosaic.version = 11 : i64} {
  func.func @_mm_kernel_single(%arg0: i32, %arg1: i32, %arg2: i32, %arg3: memref<4x32xf32, #tpu.memory_space<vmem>>, %arg4: memref<16x32xf32, #tpu.memory_space<vmem>>, %arg5: memref<4x16xf32, #tpu.memory_space<vmem>>) attributes {dimension_semantics = [#tpu.dimension_semantics<parallel>, #tpu.dimension_semantics<parallel>, #tpu.dimension_semantics<arbitrary>], iteration_bounds = array<i64: 1, 1, 1>, scalar_prefetch = 0 : i64, scratch_operands = 0 : i64, tpu.core_type = #tpu.core_type<tc>, window_params = [{transform_indices = @transform_0, window_bounds = array<i64: 4, 32>}, {transform_indices = @transform_1, window_bounds = array<i64: 16, 32>}, {transform_indices = @transform_2, window_bounds = array<i64: 4, 16>}]} {
    %c0 = arith.constant 0 : index
    %c0_0 = arith.constant 0 : index
    %0 = vector.load %arg3[%c0, %c0_0] : memref<4x32xf32, #tpu.memory_space<vmem>>, vector<4x32xf32>
    %c0_1 = arith.constant 0 : index
    %c0_2 = arith.constant 0 : index
    %1 = vector.load %arg4[%c0_1, %c0_2] : memref<16x32xf32, #tpu.memory_space<vmem>>, vector<16x32xf32>
    %cst = arith.constant dense<0.000000e+00> : vector<4x16xf32>
    %2 = tpu.matmul %0, %1, %cst {dimension_numbers = #tpu.dot_dimension_numbers<[1], [1], [0], [0], [0, 0, 1, 0], [], []>} : vector<4x32xf32>, vector<16x32xf32>, vector<4x16xf32> -> vector<4x16xf32>
    %c0_3 = arith.constant 0 : index
    %c0_4 = arith.constant 0 : index
    %3 = vector.load %arg5[%c0_3, %c0_4] : memref<4x16xf32, #tpu.memory_space<vmem>>, vector<4x16xf32>
    tpu.vector_store %arg5[%c0_3, %c0_4], %2 {strides = array<i32>} : memref<4x16xf32, #tpu.memory_space<vmem>>, vector<4x16xf32>,
    return
  }
  func.func @transform_0(%arg0: i32, %arg1: i32, %arg2: i32) -> (i32, i32) {
    %c0_i32 = arith.constant 0 : i32
    return %arg0, %arg2 : i32, i32
  }
  func.func @transform_1(%arg0: i32, %arg1: i32, %arg2: i32) -> (i32, i32) {
    %c0_i32 = arith.constant 0 : i32
    return %arg1, %arg2 : i32, i32
  }
  func.func @transform_2(%arg0: i32, %arg1: i32, %arg2: i32) -> (i32, i32) {
    %c0_i32 = arith.constant 0 : i32
    return %arg0, %arg1 : i32, i32
  }
}

module attributes {stable_mosaic.version = 11 : i64} {
  func.func @_mm_kernel_single(%arg0: i32, %arg1: i32, %arg2: i32, %arg3: memref<4x32xf32, #tpu.memory_space<vmem>>, %arg4: memref<32x128xf32, #tpu.memory_space<vmem>>, %arg5: memref<4x128xf32, #tpu.memory_space<vmem>>) attributes {dimension_semantics = [#tpu.dimension_semantics<parallel>, #tpu.dimension_semantics<parallel>, #tpu.dimension_semantics<arbitrary>], iteration_bounds = array<i64: 1, 1, 1>, scalar_prefetch = 0 : i64, scratch_operands = 0 : i64, tpu.core_type = #tpu.core_type<tc>, window_params = [{transform_indices = @transform_0, window_bounds = array<i64: 4, 32>}, {transform_indices = @transform_1, window_bounds = array<i64: 32, 128>}, {transform_indices = @transform_2, window_bounds = array<i64: 4, 128>}]} {
    %c0 = arith.constant 0 : index
    %c0_0 = arith.constant 0 : index
    %0 = vector.load %arg3[%c0, %c0_0] : memref<4x32xf32, #tpu.memory_space<vmem>>, vector<4x32xf32>
    %1 = arith.truncf %0 : vector<4x32xf32> to vector<4x32xbf16>
    %c0_1 = arith.constant 0 : index
    %c0_2 = arith.constant 0 : index
    %2 = vector.load %arg4[%c0_1, %c0_2] : memref<32x128xf32, #tpu.memory_space<vmem>>, vector<32x128xf32>
    %3 = arith.truncf %2 : vector<32x128xf32> to vector<32x128xbf16>
    %cst = arith.constant dense<0.000000e+00> : vector<4x128xf32>
    %4 = tpu.matmul %1, %3, %cst {dimension_numbers = #tpu.dot_dimension_numbers<[1], [0], [0], [1], [0, 0, 1, 1], [], []>} : vector<4x32xbf16>, vector<32x128xbf16>, vector<4x128xf32> -> vector<4x128xf32>
    %cst_3 = arith.constant 1.000000e+01 : f32
    %5 = vector.broadcast %cst_3 : f32 to vector<4x128xf32>
    %6 = arith.mulf %4, %5 : vector<4x128xf32>
    %c0_4 = arith.constant 0 : index
    %c0_5 = arith.constant 0 : index
    %7 = vector.load %arg5[%c0_4, %c0_5] : memref<4x128xf32, #tpu.memory_space<vmem>>, vector<4x128xf32>
    tpu.vector_store %arg5[%c0_4, %c0_5], %6 {strides = array<i32>} : memref<4x128xf32, #tpu.memory_space<vmem>>, vector<4x128xf32>,
    return
  }
  func.func @transform_0(%arg0: i32, %arg1: i32, %arg2: i32) -> (i32, i32) {
    %c0_i32 = arith.constant 0 : i32
    return %arg0, %arg2 : i32, i32
  }
  func.func @transform_1(%arg0: i32, %arg1: i32, %arg2: i32) -> (i32, i32) {
    %c0_i32 = arith.constant 0 : i32
    return %arg2, %arg1 : i32, i32
  }
  func.func @transform_2(%arg0: i32, %arg1: i32, %arg2: i32) -> (i32, i32) {
    %c0_i32 = arith.constant 0 : i32
    return %arg0, %arg1 : i32, i32
  }
}

module attributes {stable_mosaic.version = 11 : i64} {
  func.func @_mm_kernel_single(%arg0: i32, %arg1: i32, %arg2: i32, %arg3: memref<8x32xf32, #tpu.memory_space<vmem>>, %arg4: memref<32x32xf32, #tpu.memory_space<vmem>>, %arg5: memref<8x32xf32, #tpu.memory_space<vmem>>) attributes {dimension_semantics = [#tpu.dimension_semantics<parallel>, #tpu.dimension_semantics<parallel>, #tpu.dimension_semantics<arbitrary>], iteration_bounds = array<i64: 1, 1, 1>, scalar_prefetch = 0 : i64, scratch_operands = 0 : i64, tpu.core_type = #tpu.core_type<tc>, window_params = [{transform_indices = @transform_0, window_bounds = array<i64: 8, 32>}, {transform_indices = @transform_1, window_bounds = array<i64: 32, 32>}, {transform_indices = @transform_2, window_bounds = array<i64: 8, 32>}]} {
    %c0 = arith.constant 0 : index
    %c0_0 = arith.constant 0 : index
    %0 = vector.load %arg3[%c0, %c0_0] : memref<8x32xf32, #tpu.memory_space<vmem>>, vector<8x32xf32>
    %c0_1 = arith.constant 0 : index
    %c0_2 = arith.constant 0 : index
    %1 = vector.load %arg4[%c0_1, %c0_2] : memref<32x32xf32, #tpu.memory_space<vmem>>, vector<32x32xf32>
    %cst = arith.constant dense<0.000000e+00> : vector<8x32xf32>
    %2 = tpu.matmul %0, %1, %cst {dimension_numbers = #tpu.dot_dimension_numbers<[1], [1], [0], [0], [0, 0, 1, 0], [], []>} : vector<8x32xf32>, vector<32x32xf32>, vector<8x32xf32> -> vector<8x32xf32>
    %c0_3 = arith.constant 0 : index
    %c0_4 = arith.constant 0 : index
    %3 = vector.load %arg5[%c0_3, %c0_4] : memref<8x32xf32, #tpu.memory_space<vmem>>, vector<8x32xf32>
    tpu.vector_store %arg5[%c0_3, %c0_4], %2 {strides = array<i32>} : memref<8x32xf32, #tpu.memory_space<vmem>>, vector<8x32xf32>,
    return
  }
  func.func @transform_0(%arg0: i32, %arg1: i32, %arg2: i32) -> (i32, i32) {
    %c0_i32 = arith.constant 0 : i32
    return %arg0, %arg2 : i32, i32
  }
  func.func @transform_1(%arg0: i32, %arg1: i32, %arg2: i32) -> (i32, i32) {
    %c0_i32 = arith.constant 0 : i32
    return %arg1, %arg2 : i32, i32
  }
  func.func @transform_2(%arg0: i32, %arg1: i32, %arg2: i32) -> (i32, i32) {
    %c0_i32 = arith.constant 0 : i32
    return %arg0, %arg1 : i32, i32
  }
}

module attributes {stable_mosaic.version = 11 : i64} {
  func.func @_dist_gram_kernel(%arg0: i32, %arg1: memref<1x4x16xf32, #tpu.memory_space<vmem>>, %arg2: memref<1x4x4xf32, #tpu.memory_space<vmem>>) attributes {dimension_semantics = [#tpu.dimension_semantics<parallel>], iteration_bounds = array<i64: 4>, scalar_prefetch = 0 : i64, scratch_operands = 0 : i64, tpu.core_type = #tpu.core_type<tc>, window_params = [{transform_indices = @transform_0, window_bounds = array<i64: 1, 4, 16>}, {transform_indices = @transform_1, window_bounds = array<i64: 1, 4, 4>}]} {
    %c0 = arith.constant 0 : index
    %c0_0 = arith.constant 0 : index
    %c0_1 = arith.constant 0 : index
    %0 = vector.load %arg1[%c0, %c0_0, %c0_1] : memref<1x4x16xf32, #tpu.memory_space<vmem>>, vector<1x4x16xf32>
    %1 = vector.shape_cast %0 : vector<1x4x16xf32> to vector<4x16xf32>
    %cst = arith.constant dense<0xFF800000> : vector<4xf32>
    %2 = vector.multi_reduction <maximumf>, %1, %cst [1] : vector<4x16xf32> to vector<4xf32>
    %3 = vector.shape_cast %2 : vector<4xf32> to vector<4x1xf32>
    %4 = vector.broadcast %3 : vector<4x1xf32> to vector<4x16xf32>
    %5 = arith.subf %1, %4 : vector<4x16xf32>
    %6 = math.exp %5 : vector<4x16xf32>
    %cst_2 = arith.constant dense<0.000000e+00> : vector<4xf32>
    %7 = vector.multi_reduction <add>, %6, %cst_2 [1] : vector<4x16xf32> to vector<4xf32>
    %8 = vector.shape_cast %7 : vector<4xf32> to vector<4x1xf32>
    %9 = tpu.reciprocal %8 {approx = true} : vector<4x1xf32> -> vector<4x1xf32>
    %10 = vector.broadcast %9 : vector<4x1xf32> to vector<4x16xf32>
    %11 = arith.mulf %6, %10 : vector<4x16xf32>
    %12 = arith.mulf %11, %11 : vector<4x16xf32>
    %cst_3 = arith.constant dense<0.000000e+00> : vector<4xf32>
    %13 = vector.multi_reduction <add>, %12, %cst_3 [1] : vector<4x16xf32> to vector<4xf32>
    %14 = vector.shape_cast %13 : vector<4xf32> to vector<4x1xf32>
    %cst_4 = arith.constant 1.000000e-24 : f32
    %15 = vector.broadcast %cst_4 : f32 to vector<4x1xf32>
    %16 = arith.maximumf %14, %15 : vector<4x1xf32>
    %17 = math.rsqrt %16 : vector<4x1xf32>
    %18 = vector.broadcast %17 : vector<4x1xf32> to vector<4x16xf32>
    %19 = arith.mulf %11, %18 : vector<4x16xf32>
    %20 = arith.truncf %19 : vector<4x16xf32> to vector<4x16xbf16>
    %cst_5 = arith.constant dense<0.000000e+00> : vector<4x4xf32>
    %21 = tpu.matmul %20, %20, %cst_5 {dimension_numbers = #tpu.dot_dimension_numbers<[1], [1], [0], [0], [0, 0, 1, 0], [], []>} : vector<4x16xbf16>, vector<4x16xbf16>, vector<4x4xf32> -> vector<4x4xf32>
    %c0_6 = arith.constant 0 : index
    %c0_7 = arith.constant 0 : index
    %c0_8 = arith.constant 0 : index
    %22 = vector.load %arg2[%c0_6, %c0_7, %c0_8] : memref<1x4x4xf32, #tpu.memory_space<vmem>>, vector<1x4x4xf32>
    %23 = vector.shape_cast %22 : vector<1x4x4xf32> to vector<4x4xf32>
    %24 = vector.shape_cast %21 : vector<4x4xf32> to vector<1x4x4xf32>
    tpu.vector_store %arg2[%c0_6, %c0_7, %c0_8], %24 {strides = array<i32>} : memref<1x4x4xf32, #tpu.memory_space<vmem>>, vector<1x4x4xf32>,
    return
  }
  func.func @transform_0(%arg0: i32) -> (i32, i32, i32) {
    %c0_i32 = arith.constant 0 : i32
    %c0_i32_0 = arith.constant 0 : i32
    %c0_i32_1 = arith.constant 0 : i32
    return %arg0, %c0_i32, %c0_i32_0 : i32, i32, i32
  }
  func.func @transform_1(%arg0: i32) -> (i32, i32, i32) {
    %c0_i32 = arith.constant 0 : i32
    %c0_i32_0 = arith.constant 0 : i32
    %c0_i32_1 = arith.constant 0 : i32
    return %arg0, %c0_i32, %c0_i32_0 : i32, i32, i32
  }
}

</mosaic_0001>

<llo_original>
// kernel: ucdir_forward.9
$region0: #{ucdir_forward.9}
  #allocation0 [shape = 'u32[]', space=smem, size = 0x4, offset = 0x4, fixed_abs, tag = 'smem constant byte address 0x4 - core index']
  #allocation1 [shape = 'u32[144,128]{1,0:T(1,128)}', space=vmem, size = 0x12000, scoped, tag = 'internal scratch']
  %s0 = inlined_call_operand.vmem [shape: f32[8,8], index: 0, kind: input, shape index: {}]
  %s1 = inlined_call_operand.vmem [shape: f32[32,8], index: 1, kind: input, shape index: {}]
  %s2 = inlined_call_operand.vmem [shape: f32[1,32], index: 2, kind: input, shape index: {}]
  %s3 = inlined_call_operand.vmem [shape: f32[8,32], index: 3, kind: output, shape index: {}]
  %s4 = sld [smem:[#allocation0]]
  $region22: #{ucdir_forward.9} parent=0
    _
  %s6 = ssub.s32 1, %s4
  %s7 = scalar_select 0, %s6, %s4
  // Predicated region
  $region2: #{ucdir_forward.9} parent=0 // pred_check
    _
  $region3: #{ucdir_forward.9} parent=0 // pred_check_branch
    %9 = sbr.rel (0) target = $region5
  $region4: #{ucdir_forward.9} parent=0 // pred_region
    _
  $region5: #{ucdir_forward.9} parent=0 // pred_fallthru
    _
  // Predicated region
  $region6: #{ucdir_forward.9} parent=0 // pred_check
    _
  $region7: #{ucdir_forward.9} parent=0 // pred_check_branch
    %11 = sbr.rel (0) target = $region9
  $region8: #{ucdir_forward.9} parent=0 // pred_region
    _
  $region9: #{ucdir_forward.9} parent=0 // pred_fallthru
    _
  // Predicated region
  $region10: #{ucdir_forward.9} parent=0 // pred_check
    _
  $region11: #{ucdir_forward.9} parent=0 // pred_check_branch
    %13 = sbr.rel (0) target = $region13
  $region12: #{ucdir_forward.9} parent=0 // pred_region
    _
  $region13: #{ucdir_forward.9} parent=0 // pred_fallthru
    _
  %v15 = vld [vmem:[%s0] sm:$0xff]
  %v16 = vpack.c.bf16 %v15, %v15
  %v17 = vld [vmem:[%s1] sm:$0xff]
  %v18 = vld [vmem:[%s1 + $0x8] sm:$0xff]
  %v19 = vld [vmem:[%s1 + $0x10] sm:$0xff]
  %v20 = vld [vmem:[%s1 + $0x18] sm:$0xff]
  %v21 = vpack.c.bf16 %v18, %v17
  %v22 = vpack.c.bf16 %v20, %v19
  %v23 = vld [vmem:[%s2] sm:$0x1]
  %v25 = vlaneseq
  %v26 = vshrl.u32 %v25, 7
  %v27 = vsub.s32 0, %v26
  %v28 = vrot.slane %v23, %v27
  %vm30 = vcmask 64512
  %v32 = vsel %vm30, %v16, 0
  %v35 = vsel %vm30, %v21, 0
  %v38 = vsel %vm30, %v22, 0
  %40 = vmatprep.subr.bf16.mxu0 0
  %41 = vmatpush1.bf16.xpose.msra.mxu0 0
  %42 = vmatprep.subr.bf16.mxu0 0
  %43 = vmatpush1.bf16.xpose.msra.mxu0 0
  %44 = vmatprep.subr.bf16.mxu0 0
  %45 = vmatpush1.bf16.xpose.msra.mxu0 0
  %46 = vmatprep.subr.bf16.mxu0 0
  %47 = vmatpush1.bf16.xpose.msra.mxu0 0
  %48 = vmatprep.subr.bf16.mxu0 0
  %49 = vmatpush1.bf16.xpose.msra.mxu0 0
  %50 = vmatprep.subr.bf16.mxu0 0
  %51 = vmatpush1.bf16.xpose.msra.mxu0 0
  %52 = vmatprep.subr.bf16.mxu0 0
  %53 = vmatpush1.bf16.xpose.msra.mxu0 %v38
  %54 = vmatprep.subr.bf16.mxu0 0
  %55 = vmatpush1.bf16.xpose.msra.mxu0 %v35
  %56 = vmatprep.subr.bf16.mxu0 0
  %57 = vmatpush2.bf16.xpose.msra.mxu0 0
  %58 = vmatprep.subr.bf16.mxu0 0
  %59 = vmatpush2.bf16.xpose.msra.mxu0 0
  %60 = vmatprep.subr.bf16.mxu0 0
  %61 = vmatpush2.bf16.xpose.msra.mxu0 0
  %62 = vmatprep.subr.bf16.mxu0 0
  %63 = vmatpush2.bf16.xpose.msra.mxu0 0
  %64 = vmatprep.subr.bf16.mxu0 0
  %65 = vmatpush2.bf16.xpose.msra.mxu0 0
  %66 = vmatprep.subr.bf16.mxu0 0
  %67 = vmatpush2.bf16.xpose.msra.mxu0 0
  %68 = vmatprep.subr.bf16.mxu0 0
  %69 = vmatpush2.bf16.xpose.msra.mxu0 0
  %70 = vmatprep.subr.bf16.mxu0 0
  %71 = vmatpush2.bf16.xpose.msra.mxu0 0
  %72 = vmatprep.mubr.bf16.mxu0 0
  %73 = vmatmul.mubr.bf16.gmra.mxu0 %v32
  %v74 = vpop.f32.mrf.mxu0
  %v75 = vadd.f32 %v28, %v74
  %v76 = vpop.f32.mrf.mxu0
  %v77 = vpop.f32.mrf.mxu0
  %v78 = vpop.f32.mrf.mxu0
  %79 = vdwg.mxu0
  %v80 = vmul.f32 %v75, %v75
  %vm81 = vcmask 261120
  %v82 = vsel %vm81, %v80, 0.0
  %83 = vadd.xlane.f32.xlu0 %v82
  %v84 = vpop.xlane.xlu0 %83
  %v85 = vmax.f32 %v84, 1e-24
  %v86 = vrsqrt.pop %v85
  %v87 = vmul.f32 %v75, %v86
  %v88 = vtanh.pop %v87
  %89 = vst.msk [vmem:[%s3] sm:$0xff] %vm81, %v88
  // Predicated region
  $region14: #{ucdir_forward.9} parent=0 // pred_check
    _
  $region15: #{ucdir_forward.9} parent=0 // pred_check_branch
    %91 = sbr.rel (0) target = $region17
  $region16: #{ucdir_forward.9} parent=0 // pred_region
    _
  $region17: #{ucdir_forward.9} parent=0 // pred_fallthru
    _
  // Predicated region
  $region18: #{ucdir_forward.9} parent=0 // pred_check
    _
  $region19: #{ucdir_forward.9} parent=0 // pred_check_branch
    %93 = sbr.rel (0) target = $region21
  $region20: #{ucdir_forward.9} parent=0 // pred_region
    _
  $region21: #{ucdir_forward.9} parent=0 // pred_fallthru
    _

// kernel: ucdir_forward.8
$region0: #{ucdir_forward.8}
  #allocation0 [shape = 'u32[]', space=smem, size = 0x4, offset = 0x4, fixed_abs, tag = 'smem constant byte address 0x4 - core index']
  #allocation1 [shape = 'u32[144,128]{1,0:T(1,128)}', space=vmem, size = 0x12000, scoped, tag = 'internal scratch']
  %s0 = inlined_call_operand.vmem [shape: f32[8,8], index: 0, kind: input, shape index: {}]
  %s1 = inlined_call_operand.vmem [shape: f32[32,8], index: 1, kind: input, shape index: {}]
  %s2 = inlined_call_operand.vmem [shape: f32[1,32], index: 2, kind: input, shape index: {}]
  %s3 = inlined_call_operand.vmem [shape: f32[8,32], index: 3, kind: output, shape index: {}]
  %s4 = sld [smem:[#allocation0]]
  $region22: #{ucdir_forward.8} parent=0
    _
  %s6 = ssub.s32 1, %s4
  %s7 = scalar_select 0, %s6, %s4
  // Predicated region
  $region2: #{ucdir_forward.8} parent=0 // pred_check
    _
  $region3: #{ucdir_forward.8} parent=0 // pred_check_branch
    %9 = sbr.rel (0) target = $region5
  $region4: #{ucdir_forward.8} parent=0 // pred_region
    _
  $region5: #{ucdir_forward.8} parent=0 // pred_fallthru
    _
  // Predicated region
  $region6: #{ucdir_forward.8} parent=0 // pred_check
    _
  $region7: #{ucdir_forward.8} parent=0 // pred_check_branch
    %11 = sbr.rel (0) target = $region9
  $region8: #{ucdir_forward.8} parent=0 // pred_region
    _
  $region9: #{ucdir_forward.8} parent=0 // pred_fallthru
    _
  // Predicated region
  $region10: #{ucdir_forward.8} parent=0 // pred_check
    _
  $region11: #{ucdir_forward.8} parent=0 // pred_check_branch
    %13 = sbr.rel (0) target = $region13
  $region12: #{ucdir_forward.8} parent=0 // pred_region
    _
  $region13: #{ucdir_forward.8} parent=0 // pred_fallthru
    _
  %v15 = vld [vmem:[%s0] sm:$0xff]
  %v16 = vpack.c.bf16 %v15, %v15
  %v17 = vld [vmem:[%s1] sm:$0xff]
  %v18 = vld [vmem:[%s1 + $0x8] sm:$0xff]
  %v19 = vld [vmem:[%s1 + $0x10] sm:$0xff]
  %v20 = vld [vmem:[%s1 + $0x18] sm:$0xff]
  %v21 = vpack.c.bf16 %v18, %v17
  %v22 = vpack.c.bf16 %v20, %v19
  %v23 = vld [vmem:[%s2] sm:$0x1]
  %v25 = vlaneseq
  %v26 = vshrl.u32 %v25, 7
  %v27 = vsub.s32 0, %v26
  %v28 = vrot.slane %v23, %v27
  %vm30 = vcmask 64512
  %v32 = vsel %vm30, %v16, 0
  %v35 = vsel %vm30, %v21, 0
  %v38 = vsel %vm30, %v22, 0
  %40 = vmatprep.subr.bf16.mxu0 0
  %41 = vmatpush1.bf16.xpose.msra.mxu0 0
  %42 = vmatprep.subr.bf16.mxu0 0
  %43 = vmatpush1.bf16.xpose.msra.mxu0 0
  %44 = vmatprep.subr.bf16.mxu0 0
  %45 = vmatpush1.bf16.xpose.msra.mxu0 0
  %46 = vmatprep.subr.bf16.mxu0 0
  %47 = vmatpush1.bf16.xpose.msra.mxu0 0
  %48 = vmatprep.subr.bf16.mxu0 0
  %49 = vmatpush1.bf16.xpose.msra.mxu0 0
  %50 = vmatprep.subr.bf16.mxu0 0
  %51 = vmatpush1.bf16.xpose.msra.mxu0 0
  %52 = vmatprep.subr.bf16.mxu0 0
  %53 = vmatpush1.bf16.xpose.msra.mxu0 %v38
  %54 = vmatprep.subr.bf16.mxu0 0
  %55 = vmatpush1.bf16.xpose.msra.mxu0 %v35
  %56 = vmatprep.subr.bf16.mxu0 0
  %57 = vmatpush2.bf16.xpose.msra.mxu0 0
  %58 = vmatprep.subr.bf16.mxu0 0
  %59 = vmatpush2.bf16.xpose.msra.mxu0 0
  %60 = vmatprep.subr.bf16.mxu0 0
  %61 = vmatpush2.bf16.xpose.msra.mxu0 0
  %62 = vmatprep.subr.bf16.mxu0 0
  %63 = vmatpush2.bf16.xpose.msra.mxu0 0
  %64 = vmatprep.subr.bf16.mxu0 0
  %65 = vmatpush2.bf16.xpose.msra.mxu0 0
  %66 = vmatprep.subr.bf16.mxu0 0
  %67 = vmatpush2.bf16.xpose.msra.mxu0 0
  %68 = vmatprep.subr.bf16.mxu0 0
  %69 = vmatpush2.bf16.xpose.msra.mxu0 0
  %70 = vmatprep.subr.bf16.mxu0 0
  %71 = vmatpush2.bf16.xpose.msra.mxu0 0
  %72 = vmatprep.mubr.bf16.mxu0 0
  %73 = vmatmul.mubr.bf16.gmra.mxu0 %v32
  %v74 = vpop.f32.mrf.mxu0
  %v75 = vadd.f32 %v28, %v74
  %v76 = vpop.f32.mrf.mxu0
  %v77 = vpop.f32.mrf.mxu0
  %v78 = vpop.f32.mrf.mxu0
  %79 = vdwg.mxu0
  %v80 = vtanh.pop %v75
  %vm81 = vcmask 261120
  %82 = vst.msk [vmem:[%s3] sm:$0xff] %vm81, %v80
  // Predicated region
  $region14: #{ucdir_forward.8} parent=0 // pred_check
    _
  $region15: #{ucdir_forward.8} parent=0 // pred_check_branch
    %84 = sbr.rel (0) target = $region17
  $region16: #{ucdir_forward.8} parent=0 // pred_region
    _
  $region17: #{ucdir_forward.8} parent=0 // pred_fallthru
    _
  // Predicated region
  $region18: #{ucdir_forward.8} parent=0 // pred_check
    _
  $region19: #{ucdir_forward.8} parent=0 // pred_check_branch
    %86 = sbr.rel (0) target = $region21
  $region20: #{ucdir_forward.8} parent=0 // pred_region
    _
  $region21: #{ucdir_forward.8} parent=0 // pred_fallthru
    _

// kernel: ucdir_forward.15
$region0: #{ucdir_forward.15}
  #allocation0 [shape = 'u32[]', space=smem, size = 0x4, offset = 0x4, fixed_abs, tag = 'smem constant byte address 0x4 - core index']
  #allocation1 [shape = 'u32[144,128]{1,0:T(1,128)}', space=vmem, size = 0x12000, scoped, tag = 'internal scratch']
  %s0 = inlined_call_operand.vmem [shape: f32[4,32], index: 0, kind: input, shape index: {}]
  %s1 = inlined_call_operand.vmem [shape: f32[16,32], index: 1, kind: input, shape index: {}]
  %s2 = inlined_call_operand.vmem [shape: f32[4,16], index: 2, kind: output, shape index: {}]
  %s3 = sld [smem:[#allocation0]]
  $region18: #{ucdir_forward.15} parent=0
    _
  %s5 = ssub.s32 1, %s3
  %s6 = scalar_select 0, %s5, %s3
  // Predicated region
  $region2: #{ucdir_forward.15} parent=0 // pred_check
    _
  $region3: #{ucdir_forward.15} parent=0 // pred_check_branch
    %8 = sbr.rel (0) target = $region5
  $region4: #{ucdir_forward.15} parent=0 // pred_region
    _
  $region5: #{ucdir_forward.15} parent=0 // pred_fallthru
    _
  // Predicated region
  $region6: #{ucdir_forward.15} parent=0 // pred_check
    _
  $region7: #{ucdir_forward.15} parent=0 // pred_check_branch
    %10 = sbr.rel (0) target = $region9
  $region8: #{ucdir_forward.15} parent=0 // pred_region
    _
  $region9: #{ucdir_forward.15} parent=0 // pred_fallthru
    _
  %v11 = vld [vmem:[%s0] sm:$0xf]
  %v12 = vld [vmem:[%s1] sm:$0xff]
  %v13 = vld [vmem:[%s1 + $0x8] sm:$0xff]
  %vm14 = vcmask 261120
  %v16 = vsel %vm14, %v11, 0
  %v19 = vsel %vm14, %v12, 0
  %v22 = vsel %vm14, %v13, 0
  %24 = vmatprep.subr.mxu0 0.0
  %25 = vmatpush1.xpose.msra.mxu0 0.0
  %26 = vmatprep.subr.mxu0 0.0
  %27 = vmatpush1.xpose.msra.mxu0 0.0
  %28 = vmatprep.subr.mxu0 0.0
  %29 = vmatpush1.xpose.msra.mxu0 0.0
  %30 = vmatprep.subr.mxu0 0.0
  %31 = vmatpush1.xpose.msra.mxu0 0.0
  %32 = vmatprep.subr.mxu0 0.0
  %33 = vmatpush1.xpose.msra.mxu0 0.0
  %34 = vmatprep.subr.mxu0 0.0
  %35 = vmatpush1.xpose.msra.mxu0 0.0
  %36 = vmatprep.subr.mxu0 0.0
  %37 = vmatpush1.xpose.msra.mxu0 0.0
  %38 = vmatprep.subr.mxu0 0.0
  %39 = vmatpush1.xpose.msra.mxu0 0.0
  %40 = vmatprep.subr.mxu0 0.0
  %41 = vmatpush1.xpose.msra.mxu0 0.0
  %42 = vmatprep.subr.mxu0 0.0
  %43 = vmatpush1.xpose.msra.mxu0 0.0
  %44 = vmatprep.subr.mxu0 0.0
  %45 = vmatpush1.xpose.msra.mxu0 0.0
  %46 = vmatprep.subr.mxu0 0.0
  %47 = vmatpush1.xpose.msra.mxu0 0.0
  %48 = vmatprep.subr.mxu0 0.0
  %49 = vmatpush1.xpose.msra.mxu0 0.0
  %50 = vmatprep.subr.mxu0 0.0
  %51 = vmatpush1.xpose.msra.mxu0 0.0
  %52 = vmatprep.subr.mxu0 0.0
  %53 = vmatpush1.xpose.msra.mxu0 %v22
  %54 = vmatprep.subr.mxu0 0.0
  %55 = vmatpush1.xpose.msra.mxu0 %v19
  %56 = vmatprep.subr.mxu0 0.0
  %57 = vmatpush2.xpose.msra.mxu0 0.0
  %58 = vmatprep.subr.mxu0 0.0
  %59 = vmatpush2.xpose.msra.mxu0 0.0
  %60 = vmatprep.subr.mxu0 0.0
  %61 = vmatpush2.xpose.msra.mxu0 0.0
  %62 = vmatprep.subr.mxu0 0.0
  %63 = vmatpush2.xpose.msra.mxu0 0.0
  %64 = vmatprep.subr.mxu0 0.0
  %65 = vmatpush2.xpose.msra.mxu0 0.0
  %66 = vmatprep.subr.mxu0 0.0
  %67 = vmatpush2.xpose.msra.mxu0 0.0
  %68 = vmatprep.subr.mxu0 0.0
  %69 = vmatpush2.xpose.msra.mxu0 0.0
  %70 = vmatprep.subr.mxu0 0.0
  %71 = vmatpush2.xpose.msra.mxu0 0.0
  %72 = vmatprep.subr.mxu0 0.0
  %73 = vmatpush2.xpose.msra.mxu0 0.0
  %74 = vmatprep.subr.mxu0 0.0
  %75 = vmatpush2.xpose.msra.mxu0 0.0
  %76 = vmatprep.subr.mxu0 0.0
  %77 = vmatpush2.xpose.msra.mxu0 0.0
  %78 = vmatprep.subr.mxu0 0.0
  %79 = vmatpush2.xpose.msra.mxu0 0.0
  %80 = vmatprep.subr.mxu0 0.0
  %81 = vmatpush2.xpose.msra.mxu0 0.0
  %82 = vmatprep.subr.mxu0 0.0
  %83 = vmatpush2.xpose.msra.mxu0 0.0
  %84 = vmatprep.subr.mxu0 0.0
  %85 = vmatpush2.xpose.msra.mxu0 0.0
  %86 = vmatprep.subr.mxu0 0.0
  %87 = vmatpush2.xpose.msra.mxu0 0.0
  %88 = vmatprep.mubr.f32.mxu0 0.0
  %89 = vmatmul.mubr.f32.gmra.mxu0 %v16
  %v90 = vpop.f32.mrf.mxu0
  %v91 = vadd.f32 0.0, %v90
  %v92 = vpop.f32.mrf.mxu0
  %93 = vdwg.mxu0
  %vm94 = vcmask 125952
  %95 = vst.msk [vmem:[%s2] sm:$0xf] %vm94, %v91
  // Predicated region
  $region10: #{ucdir_forward.15} parent=0 // pred_check
    _
  $region11: #{ucdir_forward.15} parent=0 // pred_check_branch
    %97 = sbr.rel (0) target = $region13
  $region12: #{ucdir_forward.15} parent=0 // pred_region
    _
  $region13: #{ucdir_forward.15} parent=0 // pred_fallthru
    _
  // Predicated region
  $region14: #{ucdir_forward.15} parent=0 // pred_check
    _
  $region15: #{ucdir_forward.15} parent=0 // pred_check_branch
    %99 = sbr.rel (0) target = $region17
  $region16: #{ucdir_forward.15} parent=0 // pred_region
    _
  $region17: #{ucdir_forward.15} parent=0 // pred_fallthru
    _

// kernel: ucdir_forward.11
$region0: #{ucdir_forward.11}
  #allocation0 [shape = 'u32[]', space=smem, size = 0x4, offset = 0x4, fixed_abs, tag = 'smem constant byte address 0x4 - core index']
  #allocation1 [shape = 'u32[144,128]{1,0:T(1,128)}', space=vmem, size = 0x12000, scoped, tag = 'internal scratch']
  %s0 = inlined_call_operand.vmem [shape: f32[4,32], index: 0, kind: input, shape index: {}]
  %s1 = inlined_call_operand.vmem [shape: f32[32,128], index: 1, kind: input, shape index: {}]
  %s2 = inlined_call_operand.vmem [shape: f32[4,128], index: 2, kind: output, shape index: {}]
  %s3 = sld [smem:[#allocation0]]
  $region18: #{ucdir_forward.11} parent=0
    _
  %s5 = ssub.s32 1, %s3
  %s6 = scalar_select 0, %s5, %s3
  // Predicated region
  $region2: #{ucdir_forward.11} parent=0 // pred_check
    _
  $region3: #{ucdir_forward.11} parent=0 // pred_check_branch
    %8 = sbr.rel (0) target = $region5
  $region4: #{ucdir_forward.11} parent=0 // pred_region
    _
  $region5: #{ucdir_forward.11} parent=0 // pred_fallthru
    _
  // Predicated region
  $region6: #{ucdir_forward.11} parent=0 // pred_check
    _
  $region7: #{ucdir_forward.11} parent=0 // pred_check_branch
    %10 = sbr.rel (0) target = $region9
  $region8: #{ucdir_forward.11} parent=0 // pred_region
    _
  $region9: #{ucdir_forward.11} parent=0 // pred_fallthru
    _
  %v12 = vld [vmem:[%s0] sm:$0xf]
  %v13 = vpack.c.bf16 %v12, %v12
  %v14 = vld [vmem:[%s1] sm:$0xff]
  %v15 = vld [vmem:[%s1 + $0x8] sm:$0xff]
  %v16 = vld [vmem:[%s1 + $0x10] sm:$0xff]
  %v17 = vld [vmem:[%s1 + $0x18] sm:$0xff]
  %v18 = vpack.c.bf16 %v15, %v14
  %v19 = vpack.c.bf16 %v17, %v16
  %vm20 = vcmask 261120
  %v22 = vsel %vm20, %v13, 0
  %24 = vmatprep.subr.bf16.mxu0 0
  %25 = vmatpush1.bf16.msra.mxu0 0
  %26 = vmatprep.subr.bf16.mxu0 0
  %27 = vmatpush1.bf16.msra.mxu0 0
  %28 = vmatprep.subr.bf16.mxu0 0
  %29 = vmatpush1.bf16.msra.mxu0 0
  %30 = vmatprep.subr.bf16.mxu0 0
  %31 = vmatpush1.bf16.msra.mxu0 0
  %32 = vmatprep.subr.bf16.mxu0 0
  %33 = vmatpush1.bf16.msra.mxu0 0
  %34 = vmatprep.subr.bf16.mxu0 0
  %35 = vmatpush1.bf16.msra.mxu0 0
  %36 = vmatprep.subr.bf16.mxu0 0
  %37 = vmatpush1.bf16.msra.mxu0 %v19
  %38 = vmatprep.subr.bf16.mxu0 0
  %39 = vmatpush1.bf16.msra.mxu0 %v18
  %40 = vmatprep.subr.bf16.mxu0 0
  %41 = vmatpush2.bf16.msra.mxu0 0
  %42 = vmatprep.subr.bf16.mxu0 0
  %43 = vmatpush2.bf16.msra.mxu0 0
  %44 = vmatprep.subr.bf16.mxu0 0
  %45 = vmatpush2.bf16.msra.mxu0 0
  %46 = vmatprep.subr.bf16.mxu0 0
  %47 = vmatpush2.bf16.msra.mxu0 0
  %48 = vmatprep.subr.bf16.mxu0 0
  %49 = vmatpush2.bf16.msra.mxu0 0
  %50 = vmatprep.subr.bf16.mxu0 0
  %51 = vmatpush2.bf16.msra.mxu0 0
  %52 = vmatprep.subr.bf16.mxu0 0
  %53 = vmatpush2.bf16.msra.mxu0 0
  %54 = vmatprep.subr.bf16.mxu0 0
  %55 = vmatpush2.bf16.msra.mxu0 0
  %56 = vmatprep.mubr.bf16.mxu0 0
  %57 = vmatmul.mubr.bf16.gmra.mxu0 %v22
  %v58 = vpop.f32.mrf.mxu0
  %v59 = vadd.f32 0.0, %v58
  %v60 = vpop.f32.mrf.mxu0
  %v61 = vpop.f32.mrf.mxu0
  %v62 = vpop.f32.mrf.mxu0
  %63 = vdwg.mxu0
  %v64 = vmul.f32 %v59, 10.0
  %65 = vst [vmem:[%s2] sm:$0xf] %v64
  // Predicated region
  $region10: #{ucdir_forward.11} parent=0 // pred_check
    _
  $region11: #{ucdir_forward.11} parent=0 // pred_check_branch
    %67 = sbr.rel (0) target = $region13
  $region12: #{ucdir_forward.11} parent=0 // pred_region
    _
  $region13: #{ucdir_forward.11} parent=0 // pred_fallthru
    _
  // Predicated region
  $region14: #{ucdir_forward.11} parent=0 // pred_check
    _
  $region15: #{ucdir_forward.11} parent=0 // pred_check_branch
    %69 = sbr.rel (0) target = $region17
  $region16: #{ucdir_forward.11} parent=0 // pred_region
    _
  $region17: #{ucdir_forward.11} parent=0 // pred_fallthru
    _

// kernel: ucdir_forward.12
$region0: #{ucdir_forward.12}
  #allocation0 [shape = 'u32[]', space=smem, size = 0x4, offset = 0x4, fixed_abs, tag = 'smem constant byte address 0x4 - core index']
  #allocation1 [shape = 'u32[144,128]{1,0:T(1,128)}', space=vmem, size = 0x12000, scoped, tag = 'internal scratch']
  %s0 = inlined_call_operand.vmem [shape: f32[8,32], index: 0, kind: input, shape index: {}]
  %s1 = inlined_call_operand.vmem [shape: f32[32,32], index: 1, kind: input, shape index: {}]
  %s2 = inlined_call_operand.vmem [shape: f32[8,32], index: 2, kind: output, shape index: {}]
  %s3 = sld [smem:[#allocation0]]
  $region18: #{ucdir_forward.12} parent=0
    _
  %s5 = ssub.s32 1, %s3
  %s6 = scalar_select 0, %s5, %s3
  // Predicated region
  $region2: #{ucdir_forward.12} parent=0 // pred_check
    _
  $region3: #{ucdir_forward.12} parent=0 // pred_check_branch
    %8 = sbr.rel (0) target = $region5
  $region4: #{ucdir_forward.12} parent=0 // pred_region
    _
  $region5: #{ucdir_forward.12} parent=0 // pred_fallthru
    _
  // Predicated region
  $region6: #{ucdir_forward.12} parent=0 // pred_check
    _
  $region7: #{ucdir_forward.12} parent=0 // pred_check_branch
    %10 = sbr.rel (0) target = $region9
  $region8: #{ucdir_forward.12} parent=0 // pred_region
    _
  $region9: #{ucdir_forward.12} parent=0 // pred_fallthru
    _
  %v11 = vld [vmem:[%s0] sm:$0xff]
  %v12 = vld [vmem:[%s1] sm:$0xff]
  %v13 = vld [vmem:[%s1 + $0x8] sm:$0xff]
  %v14 = vld [vmem:[%s1 + $0x10] sm:$0xff]
  %v15 = vld [vmem:[%s1 + $0x18] sm:$0xff]
  %vm16 = vcmask 261120
  %v18 = vsel %vm16, %v11, 0
  %v21 = vsel %vm16, %v12, 0
  %v24 = vsel %vm16, %v13, 0
  %v27 = vsel %vm16, %v14, 0
  %v30 = vsel %vm16, %v15, 0
  %32 = vmatprep.subr.mxu0 0.0
  %33 = vmatpush1.xpose.msra.mxu0 0.0
  %34 = vmatprep.subr.mxu0 0.0
  %35 = vmatpush1.xpose.msra.mxu0 0.0
  %36 = vmatprep.subr.mxu0 0.0
  %37 = vmatpush1.xpose.msra.mxu0 0.0
  %38 = vmatprep.subr.mxu0 0.0
  %39 = vmatpush1.xpose.msra.mxu0 0.0
  %40 = vmatprep.subr.mxu0 0.0
  %41 = vmatpush1.xpose.msra.mxu0 0.0
  %42 = vmatprep.subr.mxu0 0.0
  %43 = vmatpush1.xpose.msra.mxu0 0.0
  %44 = vmatprep.subr.mxu0 0.0
  %45 = vmatpush1.xpose.msra.mxu0 0.0
  %46 = vmatprep.subr.mxu0 0.0
  %47 = vmatpush1.xpose.msra.mxu0 0.0
  %48 = vmatprep.subr.mxu0 0.0
  %49 = vmatpush1.xpose.msra.mxu0 0.0
  %50 = vmatprep.subr.mxu0 0.0
  %51 = vmatpush1.xpose.msra.mxu0 0.0
  %52 = vmatprep.subr.mxu0 0.0
  %53 = vmatpush1.xpose.msra.mxu0 0.0
  %54 = vmatprep.subr.mxu0 0.0
  %55 = vmatpush1.xpose.msra.mxu0 0.0
  %56 = vmatprep.subr.mxu0 0.0
  %57 = vmatpush1.xpose.msra.mxu0 %v30
  %58 = vmatprep.subr.mxu0 0.0
  %59 = vmatpush1.xpose.msra.mxu0 %v27
  %60 = vmatprep.subr.mxu0 0.0
  %61 = vmatpush1.xpose.msra.mxu0 %v24
  %62 = vmatprep.subr.mxu0 0.0
  %63 = vmatpush1.xpose.msra.mxu0 %v21
  %64 = vmatprep.subr.mxu0 0.0
  %65 = vmatpush2.xpose.msra.mxu0 0.0
  %66 = vmatprep.subr.mxu0 0.0
  %67 = vmatpush2.xpose.msra.mxu0 0.0
  %68 = vmatprep.subr.mxu0 0.0
  %69 = vmatpush2.xpose.msra.mxu0 0.0
  %70 = vmatprep.subr.mxu0 0.0
  %71 = vmatpush2.xpose.msra.mxu0 0.0
  %72 = vmatprep.subr.mxu0 0.0
  %73 = vmatpush2.xpose.msra.mxu0 0.0
  %74 = vmatprep.subr.mxu0 0.0
  %75 = vmatpush2.xpose.msra.mxu0 0.0
  %76 = vmatprep.subr.mxu0 0.0
  %77 = vmatpush2.xpose.msra.mxu0 0.0
  %78 = vmatprep.subr.mxu0 0.0
  %79 = vmatpush2.xpose.msra.mxu0 0.0
  %80 = vmatprep.subr.mxu0 0.0
  %81 = vmatpush2.xpose.msra.mxu0 0.0
  %82 = vmatprep.subr.mxu0 0.0
  %83 = vmatpush2.xpose.msra.mxu0 0.0
  %84 = vmatprep.subr.mxu0 0.0
  %85 = vmatpush2.xpose.msra.mxu0 0.0
  %86 = vmatprep.subr.mxu0 0.0
  %87 = vmatpush2.xpose.msra.mxu0 0.0
  %88 = vmatprep.subr.mxu0 0.0
  %89 = vmatpush2.xpose.msra.mxu0 0.0
  %90 = vmatprep.subr.mxu0 0.0
  %91 = vmatpush2.xpose.msra.mxu0 0.0
  %92 = vmatprep.subr.mxu0 0.0
  %93 = vmatpush2.xpose.msra.mxu0 0.0
  %94 = vmatprep.subr.mxu0 0.0
  %95 = vmatpush2.xpose.msra.mxu0 0.0
  %96 = vmatprep.mubr.f32.mxu0 0.0
  %97 = vmatmul.mubr.f32.gmra.mxu0 %v18
  %v98 = vpop.f32.mrf.mxu0
  %v99 = vadd.f32 0.0, %v98
  %v100 = vpop.f32.mrf.mxu0
  %101 = vdwg.mxu0
  %102 = vst.msk [vmem:[%s2] sm:$0xff] %vm16, %v99
  // Predicated region
  $region10: #{ucdir_forward.12} parent=0 // pred_check
    _
  $region11: #{ucdir_forward.12} parent=0 // pred_check_branch
    %104 = sbr.rel (0) target = $region13
  $region12: #{ucdir_forward.12} parent=0 // pred_region
    _
  $region13: #{ucdir_forward.12} parent=0 // pred_fallthru
    _
  // Predicated region
  $region14: #{ucdir_forward.12} parent=0 // pred_check
    _
  $region15: #{ucdir_forward.12} parent=0 // pred_check_branch
    %106 = sbr.rel (0) target = $region17
  $region16: #{ucdir_forward.12} parent=0 // pred_region
    _
  $region17: #{ucdir_forward.12} parent=0 // pred_fallthru
    _

// kernel: ucdir_forward.13
$region0: #{ucdir_forward.13}
  #allocation0 [shape = 'u32[]', space=smem, size = 0x4, offset = 0x4, fixed_abs, tag = 'smem constant byte address 0x4 - core index']
  #allocation1 [shape = 'u32[144,128]{1,0:T(1,128)}', space=vmem, size = 0x12000, scoped, tag = 'internal scratch']
  %s0 = inlined_call_operand.vmem [shape: f32[4,4,16], index: 0, kind: input, shape index: {}]
  %s1 = inlined_call_operand.vmem [shape: f32[4,4,4], index: 1, kind: output, shape index: {}]
  %s2 = sld [smem:[#allocation0]]
  $region37: #{ucdir_forward.13} parent=0
    _
  %s4 = ssub.s32 1, %s2
  %s5 = scalar_select 0, %s4, %s2
  loop: start=0, step=1, limit=6
  $region2: #{ucdir_forward.13} parent=0 // loop_pre_header
    _
  $region3: #{ucdir_forward.13} parent=0 // loop_header
    %s7 = sphi 0, %s11
    %p8 = scmp.ge.s32.totalorder %s7, 6
    %s17 = sphi 0, %s19
    %s20 = sphi 0, %s17
    %s21 = sphi 0, %s20
    %s37 = sphi 0, %s21
    %s43 = sphi 0, %s45
    %s46 = sphi 0, %s43
    %s47 = sphi 0, %s46
    %s63 = sphi 0, %s47
  $region4: #{ucdir_forward.13} parent=0 // loop_header_branch
    %10 = sbr.rel (%p8) target = $region8
  $region5: #{ucdir_forward.13} parent=0 // loop_body
    %s12 = ssub.s32 %s7, 1
    %s13 = ssub.s32 %s7, 2
    %s14 = sadd.s32 %s7, 1
    %s15 = ssub.s32 %s7, %s14
    %p16 = scmp.eq.s32.totalorder %s15, 0
    %s18 = sadd.s32 %s17, 1
    %s19 = scalar_select %p16, %s17, %s18
    %p22 = pneg %p16
    %p23 = scmp.eq.s32.totalorder %s7, 3
    %p24 = por %p22, %p23
    %p25 = scmp.ne.s32.totalorder %s17, %s20
    %p26 = scmp.eq.s32.totalorder %s7, 0
    %p27 = por %p25, %p26
    %p28 = scmp.ne.s32.totalorder %s17, %s20
    %p29 = scmp.eq.s32.totalorder %s12, 3
    %p30 = por %p28, %p29
    %p31 = scmp.ne.s32.totalorder %s20, %s21
    %p32 = scmp.eq.s32.totalorder %s12, 0
    %p33 = por %p31, %p32
    %p34 = scmp.ne.s32.totalorder %s20, %s21
    %p35 = scmp.eq.s32.totalorder %s13, 3
    %p36 = por %p34, %p35
    %p38 = scmp.ne.s32.totalorder %s21, %s37
    %p39 = scmp.eq.s32.totalorder %s13, 0
    %p40 = por %p38, %p39
    %s41 = ssub.s32 %s7, %s14
    %p42 = scmp.eq.s32.totalorder %s41, 0
    %s44 = sadd.s32 %s43, 1
    %s45 = scalar_select %p42, %s43, %s44
    %p48 = pneg %p42
    %p49 = scmp.eq.s32.totalorder %s7, 3
    %p50 = por %p48, %p49
    %p51 = scmp.ne.s32.totalorder %s43, %s46
    %p52 = scmp.eq.s32.totalorder %s7, 0
    %p53 = por %p51, %p52
    %p54 = scmp.ne.s32.totalorder %s43, %s46
    %p55 = scmp.eq.s32.totalorder %s12, 3
    %p56 = por %p54, %p55
    %p57 = scmp.ne.s32.totalorder %s46, %s47
    %p58 = scmp.eq.s32.totalorder %s12, 0
    %p59 = por %p57, %p58
    %p60 = scmp.ne.s32.totalorder %s46, %s47
    %p61 = scmp.eq.s32.totalorder %s13, 3
    %p62 = por %p60, %p61
    %p64 = scmp.ne.s32.totalorder %s47, %s63
    %p65 = scmp.eq.s32.totalorder %s13, 0
    %p66 = por %p64, %p65
    %p67 = scmp.le.s32.totalorder 1, %s7
    %p68 = scmp.lt.s32.totalorder %s7, 5
    %p69 = pnand %p67, %p68
    %p70 = pneg %p69
    // Predicated region
    $region9: #{ucdir_forward.13} parent=5 // pred_check
      _
    $region10: #{ucdir_forward.13} parent=5 // pred_check_branch
      %72 = sbr.rel (%p69) target = $region12
    $region11: #{ucdir_forward.13} parent=5 // pred_region
      %s73 = ssub.s32 %s7, 1
    $region12: #{ucdir_forward.13} parent=5 // pred_fallthru
      _
    %p74 = scmp.lt.s32.totalorder %s7, 4
    // Predicated region
    $region13: #{ucdir_forward.13} parent=5 // pred_check
      %p75 = pneg %p74
    $region14: #{ucdir_forward.13} parent=5 // pred_check_branch
      %77 = sbr.rel (%p75) target = $region16
    $region15: #{ucdir_forward.13} parent=5 // pred_region
      // Predicated region
      $region17: #{ucdir_forward.13} parent=15 // pred_check
        %p78 = pneg %p27
      $region18: #{ucdir_forward.13} parent=15 // pred_check_branch
        %80 = sbr.rel (%p78) target = $region20
      $region19: #{ucdir_forward.13} parent=15 // pred_region
        %p81 = scmp.lt.s32.totalorder %s7, 3
        %s82 = scalar_select %p81, %s7, 3
        %s83 = smul.addr %s82, 4
        %s84 = scalar_lea.vmem %s0, %s83
      $region20: #{ucdir_forward.13} parent=15 // pred_fallthru
        _
    $region16: #{ucdir_forward.13} parent=5 // pred_fallthru
      _
    %p85 = scmp.le.s32.totalorder 1, %s7
    %p86 = scmp.lt.s32.totalorder %s7, 5
    %p87 = pnand %p85, %p86
    %p88 = pneg %p87
    // Predicated region
    $region21: #{ucdir_forward.13} parent=5 // pred_check
      _
    $region22: #{ucdir_forward.13} parent=5 // pred_check_branch
      %90 = sbr.rel (%p87) target = $region24
    $region23: #{ucdir_forward.13} parent=5 // pred_region
      %s91 = ssub.s32 %s7, 1
      %p92 = scmp.lt.s32.totalorder %s12, 3
      %s93 = scalar_select %p92, %s12, 3
      %s94 = smul.addr %s93, 4
      %s95 = scalar_lea.vmem %s0, %s94
      %p96 = pneg %p33
      %p97 = pneg %p30
      %p98 = pneg %p59
      %p99 = pneg %p56
      %p100 = scmp.lt.s32.totalorder %s12, 3
      %s101 = scalar_select %p100, %s12, 3
      %s102 = smul.addr %s101, 4
      %s103 = scalar_lea.vmem %s1, %s102
      %p104 = scmp.lt.s32.totalorder %s12, 3
      %s105 = scalar_select %p104, %s12, 3
      %s106 = smul.addr %s105, 4
      %s107 = scalar_lea.vmem %s0, %s106
      %p108 = scmp.lt.s32.totalorder %s12, 3
      %s109 = scalar_select %p108, %s12, 3
      %s110 = smul.addr %s109, 4
      %s111 = scalar_lea.vmem %s1, %s110
      %v113 = vld [vmem:[%s107] sm:$0xf]
      %vm114 = vcmask 125952
      %v115 = vsel %vm114, %v113, -inf
      %116 = vmax.xlane.f32.xlu0 %v115
      %v117 = vpop.xlane.xlu0 %116
      %v118 = vsub.f32 %v113, %v117
      %v119 = vmul.f32 %v118, 1.442695
      %v120 = vpow.pop %v119
      %v121 = vsel %vm114, %v120, 0.0
      %122 = vadd.xlane.f32.xlu0 %v121
      %v123 = vpop.xlane.xlu0 %122
      %v124 = vrcp.pop %v123
      %v125 = vmul.f32 %v120, %v124
      %v126 = vmul.f32 %v125, %v125
      %v127 = vsel %vm114, %v126, 0.0
      %128 = vadd.xlane.f32.xlu0 %v127
      %v129 = vpop.xlane.xlu0 %128
      %v130 = vmax.f32 %v129, 1e-24
      %v131 = vrsqrt.pop %v130
      %v132 = vmul.f32 %v125, %v131
      %v133 = vpack.c.bf16 %v132, %v132
      %vm134 = vcmask 130048
      %v136 = vsel %vm134, %v133, 0
      %138 = vmatprep.subr.bf16.mxu0 0
      %139 = vmatpush1.bf16.xpose.msra.mxu0 0
      %140 = vmatprep.subr.bf16.mxu0 0
      %141 = vmatpush1.bf16.xpose.msra.mxu0 0
      %142 = vmatprep.subr.bf16.mxu0 0
      %143 = vmatpush1.bf16.xpose.msra.mxu0 0
      %144 = vmatprep.subr.bf16.mxu0 0
      %145 = vmatpush1.bf16.xpose.msra.mxu0 0
      %146 = vmatprep.subr.bf16.mxu0 0
      %147 = vmatpush1.bf16.xpose.msra.mxu0 0
      %148 = vmatprep.subr.bf16.mxu0 0
      %149 = vmatpush1.bf16.xpose.msra.mxu0 0
      %150 = vmatprep.subr.bf16.mxu0 0
      %151 = vmatpush1.bf16.xpose.msra.mxu0 0
      %152 = vmatprep.subr.bf16.mxu0 0
      %153 = vmatpush1.bf16.xpose.msra.mxu0 %v136
      %154 = vmatprep.subr.bf16.mxu0 0
      %155 = vmatpush2.bf16.xpose.msra.mxu0 0
      %156 = vmatprep.subr.bf16.mxu0 0
      %157 = vmatpush2.bf16.xpose.msra.mxu0 0
      %158 = vmatprep.subr.bf16.mxu0 0
      %159 = vmatpush2.bf16.xpose.msra.mxu0 0
      %160 = vmatprep.subr.bf16.mxu0 0
      %161 = vmatpush2.bf16.xpose.msra.mxu0 0
      %162 = vmatprep.subr.bf16.mxu0 0
      %163 = vmatpush2.bf16.xpose.msra.mxu0 0
      %164 = vmatprep.subr.bf16.mxu0 0
      %165 = vmatpush2.bf16.xpose.msra.mxu0 0
      %166 = vmatprep.subr.bf16.mxu0 0
      %167 = vmatpush2.bf16.xpose.msra.mxu0 0
      %168 = vmatprep.subr.bf16.mxu0 0
      %169 = vmatpush2.bf16.xpose.msra.mxu0 0
      %170 = vmatprep.mubr.bf16.mxu0 0
      %171 = vmatmul.mubr.bf16.gmra.mxu0 %v136
      %v172 = vpop.f32.mrf.mxu0
      %v173 = vadd.f32 0.0, %v172
      %v174 = vpop.f32.mrf.mxu0
      %v175 = vpop.f32.mrf.mxu0
      %v176 = vpop.f32.mrf.mxu0
      %177 = vdwg.mxu0
      %vm178 = vcmask 27648
      %179 = vst.msk [vmem:[%s111] sm:$0xf] %vm178, %v173
      %p180 = scmp.lt.s32.totalorder %s12, 3
      %s181 = scalar_select %p180, %s12, 3
      %s182 = smul.addr %s181, 4
      %s183 = scalar_lea.vmem %s1, %s182
      // Predicated region
      $region25: #{ucdir_forward.13} parent=23 // pred_check
        %p184 = pneg %p56
      $region26: #{ucdir_forward.13} parent=23 // pred_check_branch
        %186 = sbr.rel (%p184) target = $region28
      $region27: #{ucdir_forward.13} parent=23 // pred_region
        _
      $region28: #{ucdir_forward.13} parent=23 // pred_fallthru
        _
    $region24: #{ucdir_forward.13} parent=5 // pred_fallthru
      _
    %p187 = scmp.le.s32.totalorder 2, %s7
    // Predicated region
    $region29: #{ucdir_forward.13} parent=5 // pred_check
      %p188 = pneg %p187
    $region30: #{ucdir_forward.13} parent=5 // pred_check_branch
      %190 = sbr.rel (%p188) target = $region32
    $region31: #{ucdir_forward.13} parent=5 // pred_region
      %s191 = ssub.s32 %s7, 2
      // Predicated region
      $region33: #{ucdir_forward.13} parent=31 // pred_check
        %p192 = pneg %p62
      $region34: #{ucdir_forward.13} parent=31 // pred_check_branch
        %194 = sbr.rel (%p192) target = $region36
      $region35: #{ucdir_forward.13} parent=31 // pred_region
        %p195 = scmp.lt.s32.totalorder %s13, 3
        %s196 = scalar_select %p195, %s13, 3
        %s197 = smul.addr %s196, 4
        %s198 = scalar_lea.vmem %s1, %s197
      $region36: #{ucdir_forward.13} parent=31 // pred_fallthru
        _
    $region32: #{ucdir_forward.13} parent=5 // pred_fallthru
      _
  $region6: #{ucdir_forward.13} parent=0 // loop_footer
    %s11 = sadd.s32 1, %s7
  $region7: #{ucdir_forward.13} parent=0 // loop_footer_branch
    %6 = sbr.rel target = $region3
  $region8: #{ucdir_forward.13} parent=0 // loop_exit
    _

</llo_original>
